<compile_context>
chip_gen: v7x
topology: tpu7x:2x2x1
jax: 0.10.0
libtpu: 0.0.40
codegen_flags: <defaults>
</compile_context>

<pallas_src>
import functools

import jax
import jax.numpy as jnp
from jax.experimental import pallas as pl
from jax.experimental.pallas import tpu as pltpu


N_OBS = 27     # linear1 input dim implied by the module (state[:, 24:27] + 24)
HIDDEN = 32
KP = 32        # n_obs padded to a sublane multiple (27 -> 32)
HP = 128       # hidden / head lane dim padded to a full lane tile
OUTW = 8       # narrow output width (3 useful lanes, padded to 8)


def actor_kernel(x_ref, w_ref, wh_ref, b_ref, o_ref, *, kp, hp, outw):
    # x: (TB, KP) bf16 (pad + cast already done in one fused wrapper op).
    x = x_ref[...]

    # Static, tile-aligned sublane slices of the packed bf16 weight blob.
    w1 = w_ref[0:kp, :]               # (KP, HP) bf16
    w2 = w_ref[kp:kp + hp, :]         # (HP, HP) bf16

    # Packed f32 bias / constant blob: one row each.
    b1 = b_ref[0:1, :]                # (1, HP)
    b2 = b_ref[1:2, :]
    b345 = b_ref[2:3, :]
    scale = b_ref[3:4, :]             # [15, 10, 50, 0, ...]
    offset = b_ref[4:5, :]            # [15, 10,  0, 0, ...]

    # Layers 1 / 2: bf16 matmul, f32 accumulate, f32 element-wise (v5e-safe).
    h1 = jnp.dot(x, w1, preferred_element_type=jnp.float32)
    h1 = jnp.maximum(h1 + b1, 0.0)
    h2 = jnp.dot(h1.astype(jnp.bfloat16), w2, preferred_element_type=jnp.float32)
    h2 = jnp.maximum(h2 + b2, 0.0)

    # Fused heads: f32 weights (accuracy under the x30/x20/x50 rescale),
    # tanh on the EUP, compile-time scale/offset loaded from the bias blob.
    z = jnp.dot(h2, wh_ref[...], preferred_element_type=jnp.float32)  # (TB, HP)
    t = jnp.tanh(z + b345)
    y = t * scale + offset            # lanes >= 3 are exactly 0

    # Narrow (TB, 8) store: 16x less output HBM traffic than a 128-lane slab.
    o_ref[...] = y[:, :outw]


def _round_up(x, m):
    return ((x + m - 1) // m) * m


def _cdiv(a, b):
    return (a + b - 1) // b


def _choose_tiling(B):
    """Pick (batch tile, num grid steps) at trace time.

    - Tiles are multiples of 16 sublanes (bf16 input packing).
    - For B > 32 the grid has an even number of steps (>= 2) so the
      "parallel" batch axis shards across v7x's two TensorCores.
    - Per-tile rows capped at 1024: VMEM-safe on all generations (v5e's
      16 MiB default scoped limit included) while keeping grid-step
      overhead negligible on single-TC v5e/v6e.
    - TB is adaptive, so batch-pad waste is < 16 rows per tile.
    """
    SUB = 16
    TB_CAP = 1024
    if B <= 32:
        return _round_up(B, SUB), 1
    nb = max(2, _round_up(_cdiv(B, TB_CAP), 2))
    tb = _round_up(_cdiv(B, nb), SUB)
    return tb, nb


@jax.jit
def actor_forward(state, w_blob, wh_blob, b_blob):
    """state: (B, n_obs) f32. Returns (B, 3) f32 = [x1, x2, x3]."""
    B, K = state.shape
    TB, nb = _choose_tiling(B)
    Bp = TB * nb

    # Pad batch rows / feature lanes AND cast to bf16 in one fused pass.
    xp = jnp.zeros((Bp, KP), jnp.bfloat16).at[:B, :K].set(
        state.astype(jnp.bfloat16))

    out = pl.pallas_call(
        functools.partial(actor_kernel, kp=KP, hp=HP, outw=OUTW),
        out_shape=jax.ShapeDtypeStruct((Bp, OUTW), jnp.float32),
        grid=(nb,),
        in_specs=[
            pl.BlockSpec((TB, KP), lambda i: (i, 0)),        # state tile (bf16)
            pl.BlockSpec((KP + HP, HP), lambda i: (0, 0)),   # W1|W2 blob (bf16)
            pl.BlockSpec((HP, HP), lambda i: (0, 0)),        # fused head weights (f32)
            pl.BlockSpec((8, HP), lambda i: (0, 0)),         # biases + scale/offset (f32)
        ],
        out_specs=pl.BlockSpec((TB, OUTW), lambda i: (i, 0)),
        compiler_params=pltpu.CompilerParams(
            dimension_semantics=("parallel",)),  # batch shards over v7x's 2 TCs (nb >= 2)
    )(xp, w_blob, wh_blob, b_blob)

    return out[:B, :3]


def make_params(key, n_obs, hidden, init_w=0.003):
    """Synthetic params matching the PyTorch shapes/init ranges.

    Weights stored [in, out] (transposed vs. torch's [out, in]).
    nn.Linear default init: U(-1/sqrt(fan_in), 1/sqrt(fan_in));
    linear3/4/5 re-initialized with U(-init_w, init_w).
    """
    ks = jax.random.split(key, 10)
    bound1 = 1.0 / float(n_obs) ** 0.5
    bound2 = 1.0 / float(hidden) ** 0.5
    w1 = jax.random.uniform(ks[0], (n_obs, hidden), jnp.float32, -bound1, bound1)
    b1 = jax.random.uniform(ks[1], (hidden,), jnp.float32, -bound1, bound1)
    w2 = jax.random.uniform(ks[2], (hidden, hidden), jnp.float32, -bound2, bound2)
    b2 = jax.random.uniform(ks[3], (hidden,), jnp.float32, -bound2, bound2)
    w3 = jax.random.uniform(ks[4], (hidden, 1), jnp.float32, -init_w, init_w)
    b3 = jax.random.uniform(ks[5], (1,), jnp.float32, -init_w, init_w)
    w4 = jax.random.uniform(ks[6], (hidden, 1), jnp.float32, -init_w, init_w)
    b4 = jax.random.uniform(ks[7], (1,), jnp.float32, -init_w, init_w)
    w5 = jax.random.uniform(ks[8], (hidden, 1), jnp.float32, -init_w, init_w)
    b5 = jax.random.uniform(ks[9], (1,), jnp.float32, -init_w, init_w)
    return w1, b1, w2, b2, w3, b3, w4, b4, w5, b5


def pack_params(params):
    """Pack params for the kernel.

    Returns:
      w_blob:  (KP+HP, HP) bf16 -- W1 (padded) stacked over W2 (padded).
      wh_blob: (HP, HP) f32     -- fused head weights [W3|W4|W5] zero-padded.
      b_blob:  (8, HP) f32      -- rows: b1, b2, b345, scale, offset.
    """
    w1, b1, w2, b2, w3, b3, w4, b4, w5, b5 = params
    n_obs, hidden = w1.shape

    w1p = jnp.zeros((KP, HP), jnp.float32).at[:n_obs, :hidden].set(w1)
    w2p = jnp.zeros((HP, HP), jnp.float32).at[:hidden, :hidden].set(w2)
    w_blob = jnp.concatenate([w1p, w2p], axis=0).astype(jnp.bfloat16)  # (160, 128)

    w345 = jnp.concatenate([w3, w4, w5], axis=1)                       # (hidden, 3)
    wh_blob = jnp.zeros((HP, HP), jnp.float32).at[:hidden, :3].set(w345)

    b345 = jnp.concatenate([b3, b4, b5])                               # (3,)
    # (0.5*t+0.5)*30 = 15*t + 15 ; (0.5*t+0.5)*20 = 10*t + 10 ; 50*t
    scale = jnp.zeros((HP,), jnp.float32).at[0].set(15.0).at[1].set(10.0).at[2].set(50.0)
    offset = jnp.zeros((HP,), jnp.float32).at[0].set(15.0).at[1].set(10.0)
    b_blob = (jnp.zeros((8, HP), jnp.float32)
              .at[0, :hidden].set(b1)
              .at[1, :hidden].set(b2)
              .at[2, :3].set(b345)
              .at[3, :].set(scale)
              .at[4, :].set(offset))
    return w_blob, wh_blob, b_blob


def reference_forward(state, params):
    """Pure-JAX f32 reference, faithful to the PyTorch forward."""
    w1, b1, w2, b2, w3, b3, w4, b4, w5, b5 = params
    h1 = jax.nn.relu(state @ w1 + b1)
    h2 = jax.nn.relu(h1 @ w2 + b2)
    x1 = (0.5 * jnp.tanh(h2 @ w3 + b3) + 0.5) * 30.0
    x2 = (0.5 * jnp.tanh(h2 @ w4 + b4) + 0.5) * 20.0
    x3 = jnp.tanh(h2 @ w5 + b5) * 50.0
    return jnp.concatenate([x1, x2, x3], axis=1)


if __name__ == "__main__":
    # Shapes implied by the module: n_obs = 27 (state[:, 24:27] + 24), hidden = 32.
    B = 8

    key = jax.random.PRNGKey(0)
    k_state, k_params = jax.random.split(key)
    state = jax.random.normal(k_state, (B, N_OBS), dtype=jnp.float32)
    params = make_params(k_params, N_OBS, HIDDEN)
    w_blob, wh_blob, b_blob = pack_params(params)

    out = actor_forward(state, w_blob, wh_blob, b_blob)       # (B, 3)
    # torch's .squeeze(0): drops leading axis only if batch == 1.
    out = out[0] if out.shape[0] == 1 else out
    out = jax.block_until_ready(out)

    ref = reference_forward(state, params)
    # bf16 W1/W2 + bf16 activations introduce small deviations; heads are f32.
    assert jnp.allclose(out, ref, atol=5e-2, rtol=1e-3), "mismatch vs f32 reference"

    # TODO(synk): nn.LSTM is declared in __init__ but unused (commented out) in
    # forward(); it is intentionally not implemented here.
    print("KERNEL_OK")
</pallas_src>

<mosaic_0001>
module attributes {stable_mosaic.version = 11 : i64} {
  func.func @actor_kernel(%arg0: i32, %arg1: memref<16x32xbf16, #tpu.memory_space<vmem>>, %arg2: memref<160x128xbf16, #tpu.memory_space<vmem>>, %arg3: memref<128x128xf32, #tpu.memory_space<vmem>>, %arg4: memref<8x128xf32, #tpu.memory_space<vmem>>, %arg5: memref<16x8xf32, #tpu.memory_space<vmem>>) attributes {dimension_semantics = [#tpu.dimension_semantics<parallel>], iteration_bounds = array<i64: 1>, scalar_prefetch = 0 : i64, scratch_operands = 0 : i64, tpu.core_type = #tpu.core_type<tc>, window_params = [{transform_indices = @transform_0, window_bounds = array<i64: 16, 32>}, {pipeline_mode = #tpu.pipeline_mode<synchronous>, transform_indices = @transform_1, window_bounds = array<i64: 160, 128>}, {pipeline_mode = #tpu.pipeline_mode<synchronous>, transform_indices = @transform_2, window_bounds = array<i64: 128, 128>}, {pipeline_mode = #tpu.pipeline_mode<synchronous>, transform_indices = @transform_3, window_bounds = array<i64: 8, 128>}, {transform_indices = @transform_4, window_bounds = array<i64: 16, 8>}]} {
    %c0 = arith.constant 0 : index
    %c0_0 = arith.constant 0 : index
    %0 = vector.load %arg1[%c0, %c0_0] : memref<16x32xbf16, #tpu.memory_space<vmem>>, vector<16x32xbf16>
    %c0_1 = arith.constant 0 : index
    %c0_2 = arith.constant 0 : index
    %1 = vector.load %arg2[%c0_1, %c0_2] : memref<160x128xbf16, #tpu.memory_space<vmem>>, vector<32x128xbf16>
    %c32 = arith.constant 32 : index
    %c0_3 = arith.constant 0 : index
    %2 = vector.load %arg2[%c32, %c0_3] : memref<160x128xbf16, #tpu.memory_space<vmem>>, vector<128x128xbf16>
    %c0_4 = arith.constant 0 : index
    %c0_5 = arith.constant 0 : index
    %3 = vector.load %arg4[%c0_4, %c0_5] : memref<8x128xf32, #tpu.memory_space<vmem>>, vector<1x128xf32>
    %c1 = arith.constant 1 : index
    %c0_6 = arith.constant 0 : index
    %4 = vector.load %arg4[%c1, %c0_6] : memref<8x128xf32, #tpu.memory_space<vmem>>, vector<1x128xf32>
    %c2 = arith.constant 2 : index
    %c0_7 = arith.constant 0 : index
    %5 = vector.load %arg4[%c2, %c0_7] : memref<8x128xf32, #tpu.memory_space<vmem>>, vector<1x128xf32>
    %c3 = arith.constant 3 : index
    %c0_8 = arith.constant 0 : index
    %6 = vector.load %arg4[%c3, %c0_8] : memref<8x128xf32, #tpu.memory_space<vmem>>, vector<1x128xf32>
    %c4 = arith.constant 4 : index
    %c0_9 = arith.constant 0 : index
    %7 = vector.load %arg4[%c4, %c0_9] : memref<8x128xf32, #tpu.memory_space<vmem>>, vector<1x128xf32>
    %cst = arith.constant dense<0.000000e+00> : vector<16x128xf32>
    %8 = tpu.matmul %0, %1, %cst {dimension_numbers = #tpu.dot_dimension_numbers<[1], [0], [0], [1], [0, 0, 1, 1], [], []>} : vector<16x32xbf16>, vector<32x128xbf16>, vector<16x128xf32> -> vector<16x128xf32>
    %9 = vector.broadcast %3 : vector<1x128xf32> to vector<16x128xf32>
    %10 = arith.addf %8, %9 : vector<16x128xf32>
    %cst_10 = arith.constant 0.000000e+00 : f32
    %11 = vector.broadcast %cst_10 : f32 to vector<16x128xf32>
    %12 = arith.maximumf %10, %11 : vector<16x128xf32>
    %13 = arith.truncf %12 : vector<16x128xf32> to vector<16x128xbf16>
    %cst_11 = arith.constant dense<0.000000e+00> : vector<16x128xf32>
    %14 = tpu.matmul %13, %2, %cst_11 {dimension_numbers = #tpu.dot_dimension_numbers<[1], [0], [0], [1], [0, 0, 1, 1], [], []>} : vector<16x128xbf16>, vector<128x128xbf16>, vector<16x128xf32> -> vector<16x128xf32>
    %15 = vector.broadcast %4 : vector<1x128xf32> to vector<16x128xf32>
    %16 = arith.addf %14, %15 : vector<16x128xf32>
    %cst_12 = arith.constant 0.000000e+00 : f32
    %17 = vector.broadcast %cst_12 : f32 to vector<16x128xf32>
    %18 = arith.maximumf %16, %17 : vector<16x128xf32>
    %c0_13 = arith.constant 0 : index
    %c0_14 = arith.constant 0 : index
    %19 = vector.load %arg3[%c0_13, %c0_14] : memref<128x128xf32, #tpu.memory_space<vmem>>, vector<128x128xf32>
    %cst_15 = arith.constant dense<0.000000e+00> : vector<16x128xf32>
    %20 = tpu.matmul %18, %19, %cst_15 {dimension_numbers = #tpu.dot_dimension_numbers<[1], [0], [0], [1], [0, 0, 1, 1], [], []>} : vector<16x128xf32>, vector<128x128xf32>, vector<16x128xf32> -> vector<16x128xf32>
    %21 = vector.broadcast %5 : vector<1x128xf32> to vector<16x128xf32>
    %22 = arith.addf %20, %21 : vector<16x128xf32>
    %23 = math.tanh %22 : vector<16x128xf32>
    %24 = vector.broadcast %6 : vector<1x128xf32> to vector<16x128xf32>
    %25 = arith.mulf %23, %24 : vector<16x128xf32>
    %26 = vector.broadcast %7 : vector<1x128xf32> to vector<16x128xf32>
    %27 = arith.addf %25, %26 : vector<16x128xf32>
    %28 = vector.extract_strided_slice %27 {offsets = [0, 0], sizes = [16, 8], strides = [1, 1]} : vector<16x128xf32> to vector<16x8xf32>
    %c0_16 = arith.constant 0 : index
    %c0_17 = arith.constant 0 : index
    %29 = vector.load %arg5[%c0_16, %c0_17] : memref<16x8xf32, #tpu.memory_space<vmem>>, vector<16x8xf32>
    tpu.vector_store %arg5[%c0_16, %c0_17], %28 {strides = array<i32>} : memref<16x8xf32, #tpu.memory_space<vmem>>, vector<16x8xf32>,
    return
  }
  func.func @transform_0(%arg0: i32) -> (i32, i32) {
    %c0_i32 = arith.constant 0 : i32
    %c0_i32_0 = arith.constant 0 : i32
    return %arg0, %c0_i32 : i32, i32
  }
  func.func @transform_1(%arg0: i32) -> (i32, i32) {
    %c0_i32 = arith.constant 0 : i32
    %c0_i32_0 = arith.constant 0 : i32
    %c0_i32_1 = arith.constant 0 : i32
    return %c0_i32, %c0_i32_0 : i32, i32
  }
  func.func @transform_2(%arg0: i32) -> (i32, i32) {
    %c0_i32 = arith.constant 0 : i32
    %c0_i32_0 = arith.constant 0 : i32
    %c0_i32_1 = arith.constant 0 : i32
    return %c0_i32, %c0_i32_0 : i32, i32
  }
  func.func @transform_3(%arg0: i32) -> (i32, i32) {
    %c0_i32 = arith.constant 0 : i32
    %c0_i32_0 = arith.constant 0 : i32
    %c0_i32_1 = arith.constant 0 : i32
    return %c0_i32, %c0_i32_0 : i32, i32
  }
  func.func @transform_4(%arg0: i32) -> (i32, i32) {
    %c0_i32 = arith.constant 0 : i32
    %c0_i32_0 = arith.constant 0 : i32
    return %arg0, %c0_i32 : i32, i32
  }
}

</mosaic_0001>

<llo_original>
// kernel: actor_forward.1
$region0: #{actor_forward.1}
  #allocation0 [shape = 'u32[]', space=smem, size = 0x4, offset = 0x4, fixed_abs, tag = 'smem constant byte address 0x4 - core index']
  #allocation1 [shape = 'u32[144,128]{1,0:T(1,128)}', space=vmem, size = 0x12000, scoped, tag = 'internal scratch']
  %s0 = inlined_call_operand.vmem [shape: bf16[16,32], index: 0, kind: input, shape index: {}]
  %s1 = inlined_call_operand.hbm [shape: bf16[160,128], index: 1, kind: input, shape index: {}]
  %s2 = inlined_call_operand.hbm [shape: f32[128,128], index: 2, kind: input, shape index: {}]
  %s3 = inlined_call_operand.vmem [shape: f32[8,128], index: 3, kind: input, shape index: {}]
  %s4 = inlined_call_operand.vmem [shape: f32[16,8], index: 4, kind: output, shape index: {}]
  %s5 = sld [smem:[#allocation0]]
  $region34: #{actor_forward.1} parent=0
    _
  %s7 = ssub.s32 1, %s5
  %s8 = scalar_select 0, %s7, %s5
  $region1: #{actor_forward.1} parent=0
    #allocation2 [shape = 'u8[40960]{0}', space=vmem, size = 0xa000, scoped, tag = 'input window, operand 1, single buffered']
    #allocation3 [shape = 's32[1]{0}', space=sflag, size = 0x4, scoped, tag = 'scoped memory for actor_forward.1']
    #allocation4 [shape = 'u8[65536]{0}', space=vmem, size = 0x10000, scoped, tag = 'input window, operand 2, single buffered']
    #allocation5 [shape = 's32[1]{0}', space=sflag, size = 0x4, scoped, tag = 'scoped memory for actor_forward.1']
    %9 = vsyncpa [#allocation3], 0
    %10 = vsyncpa [#allocation5], 0
    // Predicated region
    $region2: #{actor_forward.1} parent=1 // pred_check
      _
    $region3: #{actor_forward.1} parent=1 // pred_check_branch
      %12 = sbr.rel (0) target = $region5
    $region4: #{actor_forward.1} parent=1 // pred_region
      _
    $region5: #{actor_forward.1} parent=1 // pred_fallthru
      _
    // Predicated region
    $region6: #{actor_forward.1} parent=1 // pred_check
      _
    $region7: #{actor_forward.1} parent=1 // pred_check_branch
      %14 = sbr.rel (0) target = $region9
    $region8: #{actor_forward.1} parent=1 // pred_region
      %s16 = ssub.s32 1280, 1280
      %17 = vsyncadd [#allocation3], %s16
      %s18 = sshll.u32 [#allocation2], 4
      %s19 = int_to_ptr.vmem [resolvable:$true] %s18
      %24 = dma.hbm_to_vmem [thread:$0]  %s1, 1280, %s19, [#allocation3], 64, 64, 4
    $region9: #{actor_forward.1} parent=1 // pred_fallthru
      _
    // Predicated region
    $region10: #{actor_forward.1} parent=1 // pred_check
      _
    $region11: #{actor_forward.1} parent=1 // pred_check_branch
      %26 = sbr.rel (0) target = $region13
    $region12: #{actor_forward.1} parent=1 // pred_region
      %s28 = ssub.s32 2048, 2048
      %29 = vsyncadd [#allocation5], %s28
      %s30 = sshll.u32 [#allocation4], 4
      %s31 = int_to_ptr.vmem [resolvable:$true] %s30
      %36 = dma.hbm_to_vmem [thread:$0]  %s2, 2048, %s31, [#allocation5], 128, 128, 8
    $region13: #{actor_forward.1} parent=1 // pred_fallthru
      _
    // Predicated region
    $region14: #{actor_forward.1} parent=1 // pred_check
      _
    $region15: #{actor_forward.1} parent=1 // pred_check_branch
      %38 = sbr.rel (0) target = $region17
    $region16: #{actor_forward.1} parent=1 // pred_region
      _
    $region17: #{actor_forward.1} parent=1 // pred_fallthru
      _
    // Predicated region
    $region18: #{actor_forward.1} parent=1 // pred_check
      _
    $region19: #{actor_forward.1} parent=1 // pred_check_branch
      %40 = sbr.rel (0) target = $region21
    $region20: #{actor_forward.1} parent=1 // pred_region
      %41 = dma.done [#allocation3], 1280
    $region21: #{actor_forward.1} parent=1 // pred_fallthru
      _
    // Predicated region
    $region22: #{actor_forward.1} parent=1 // pred_check
      _
    $region23: #{actor_forward.1} parent=1 // pred_check_branch
      %43 = sbr.rel (0) target = $region25
    $region24: #{actor_forward.1} parent=1 // pred_region
      %44 = dma.done [#allocation5], 2048
    $region25: #{actor_forward.1} parent=1 // pred_fallthru
      _
    %v46 = vld [vmem:[%s0] sm:$0xf]
    %v47 = vld [vmem:[%s0 + $0x4] sm:$0xf]
    %v48 = vld [vmem:[#allocation2] sm:$0xf]
    %v49 = vld [vmem:[#allocation2 + $0x4] sm:$0xf]
    %v50 = vld [vmem:[#allocation2 + $0x8] sm:$0xf]
    %v51 = vld [vmem:[#allocation2 + $0xc] sm:$0xf]
    %v52 = vld [vmem:[#allocation2 + $0x10] sm:$0xf]
    %v53 = vld [vmem:[#allocation2 + $0x14] sm:$0xf]
    %v54 = vld [vmem:[#allocation2 + $0x18] sm:$0xf]
    %v55 = vld [vmem:[#allocation2 + $0x1c] sm:$0xf]
    %v56 = vld [vmem:[#allocation2 + $0x20] sm:$0xf]
    %v57 = vld [vmem:[#allocation2 + $0x24] sm:$0xf]
    %v58 = vld [vmem:[#allocation2 + $0x28] sm:$0xf]
    %v59 = vld [vmem:[#allocation2 + $0x2c] sm:$0xf]
    %v60 = vld [vmem:[#allocation2 + $0x30] sm:$0xf]
    %v61 = vld [vmem:[#allocation2 + $0x34] sm:$0xf]
    %v62 = vld [vmem:[#allocation2 + $0x38] sm:$0xf]
    %v63 = vld [vmem:[#allocation2 + $0x3c] sm:$0xf]
    %v64 = vld [vmem:[#allocation2 + $0x40] sm:$0xf]
    %v65 = vld [vmem:[#allocation2 + $0x44] sm:$0xf]
    %v66 = vld [vmem:[#allocation2 + $0x48] sm:$0xf]
    %v67 = vld [vmem:[#allocation2 + $0x4c] sm:$0xf]
    %v68 = vld [vmem:[%s3] sm:$0x1]
    %v69 = vld [vmem:[%s3 + $0x1] sm:$0x1]
    %v70 = vld [vmem:[%s3 + $0x2] sm:$0x1]
    %v71 = vld [vmem:[%s3 + $0x3] sm:$0x1]
    %v72 = vld [vmem:[%s3 + $0x4] sm:$0x1]
    %v73 = vlaneseq
    %v74 = vshrl.u32 %v73, 7
    %v75 = vsub.s32 0, %v74
    %v76 = vrot.slane %v68, %v75
    %v79 = vunpack.c.l.b16 %v46
    %v80 = vunpack.c.l.b16 %v47
    %v81 = vpack.c.b16 %v80, %v79
    %v86 = vunpack.c.l.b16 %v48
    %v87 = vunpack.c.l.b16 %v49
    %v88 = vunpack.c.l.b16 %v50
    %v89 = vunpack.c.l.b16 %v51
    %v90 = vpack.c.b16 %v87, %v86
    %v91 = vpack.c.b16 %v89, %v88
    %vm94 = vcmask 261120
    %v96 = vsel %vm94, %v81, 0
    %98 = vmatprep.subr.bf16.mxu0 0
    %99 = vmatpush1.bf16.msra.mxu0 %v90
    %100 = vmatprep.subr.bf16.mxu0 0
    %101 = vmatpush1.bf16.msra.mxu0 %v91
    %102 = vmatprep.subr.bf16.mxu0 0
    %103 = vmatpush1.bf16.msra.mxu0 0
    %104 = vmatprep.subr.bf16.mxu0 0
    %105 = vmatpush1.bf16.msra.mxu0 0
    %106 = vmatprep.subr.bf16.mxu0 0
    %107 = vmatpush1.bf16.msra.mxu0 0
    %108 = vmatprep.subr.bf16.mxu0 0
    %109 = vmatpush1.bf16.msra.mxu0 0
    %110 = vmatprep.subr.bf16.mxu0 0
    %111 = vmatpush1.bf16.msra.mxu0 0
    %112 = vmatprep.subr.bf16.mxu0 0
    %113 = vmatpush1.bf16.msra.mxu0 0
    %114 = vmatprep.subr.bf16.mxu0 0
    %115 = vmatpush1.bf16.msra.mxu0 0
    %116 = vmatprep.subr.bf16.mxu0 0
    %117 = vmatpush1.bf16.msra.mxu0 0
    %118 = vmatprep.subr.bf16.mxu0 0
    %119 = vmatpush1.bf16.msra.mxu0 0
    %120 = vmatprep.subr.bf16.mxu0 0
    %121 = vmatpush1.bf16.msra.mxu0 0
    %122 = vmatprep.subr.bf16.mxu0 0
    %123 = vmatpush1.bf16.msra.mxu0 0
    %124 = vmatprep.subr.bf16.mxu0 0
    %125 = vmatpush1.bf16.msra.mxu0 0
    %126 = vmatprep.subr.bf16.mxu0 0
    %127 = vmatpush1.bf16.msra.mxu0 0
    %128 = vmatprep.subr.bf16.mxu0 0
    %129 = vmatpush1.bf16.msra.mxu0 0
    %130 = vmatprep.mubr.bf16.mxu0 0
    %131 = vmatmul.mubr.bf16.gmra.mrb[0].mxu0 %v96
    %v132 = vpop.f32.mrb[0].mxu0
    %v133 = vadd.f32 %v76, %v132
    %v134 = vpop.f32.mrb[0].mxu0
    %v135 = vpop.f32.mrb[0].mxu0
    %v136 = vadd.f32 %v76, %v135
    %v137 = vpop.f32.mrb[0].mxu0
    %138 = vdwg.mxu0
    %v139 = vmax.f32 %v133, 0.0
    %v140 = vmax.f32 %v136, 0.0
    %v141 = vpack.c.bf16 %v140, %v139
    %v142 = vlaneseq
    %v143 = vshrl.u32 %v142, 7
    %v144 = vsub.s32 0, %v143
    %v145 = vrot.slane %v69, %v144
    %v162 = vunpack.c.l.b16 %v52
    %v163 = vunpack.c.l.b16 %v53
    %v164 = vunpack.c.l.b16 %v54
    %v165 = vunpack.c.l.b16 %v55
    %v166 = vunpack.c.l.b16 %v56
    %v167 = vunpack.c.l.b16 %v57
    %v168 = vunpack.c.l.b16 %v58
    %v169 = vunpack.c.l.b16 %v59
    %v170 = vunpack.c.l.b16 %v60
    %v171 = vunpack.c.l.b16 %v61
    %v172 = vunpack.c.l.b16 %v62
    %v173 = vunpack.c.l.b16 %v63
    %v174 = vunpack.c.l.b16 %v64
    %v175 = vunpack.c.l.b16 %v65
    %v176 = vunpack.c.l.b16 %v66
    %v177 = vunpack.c.l.b16 %v67
    %v178 = vpack.c.b16 %v163, %v162
    %v179 = vpack.c.b16 %v165, %v164
    %v180 = vpack.c.b16 %v167, %v166
    %v181 = vpack.c.b16 %v169, %v168
    %v182 = vpack.c.b16 %v171, %v170
    %v183 = vpack.c.b16 %v173, %v172
    %v184 = vpack.c.b16 %v175, %v174
    %v185 = vpack.c.b16 %v177, %v176
    %194 = vmatprep.subr.bf16.mxu0 0
    %195 = vmatpush1.bf16.msra.mxu0 %v178
    %196 = vmatprep.subr.bf16.mxu0 0
    %197 = vmatpush1.bf16.msra.mxu0 %v179
    %198 = vmatprep.subr.bf16.mxu0 0
    %199 = vmatpush1.bf16.msra.mxu0 %v180
    %200 = vmatprep.subr.bf16.mxu0 0
    %201 = vmatpush1.bf16.msra.mxu0 %v181
    %202 = vmatprep.subr.bf16.mxu0 0
    %203 = vmatpush1.bf16.msra.mxu0 %v182
    %204 = vmatprep.subr.bf16.mxu0 0
    %205 = vmatpush1.bf16.msra.mxu0 %v183
    %206 = vmatprep.subr.bf16.mxu0 0
    %207 = vmatpush1.bf16.msra.mxu0 %v184
    %208 = vmatprep.subr.bf16.mxu0 0
    %209 = vmatpush1.bf16.msra.mxu0 %v185
    %210 = vmatprep.subr.bf16.mxu0 0
    %211 = vmatpush1.bf16.msra.mxu0 0
    %212 = vmatprep.subr.bf16.mxu0 0
    %213 = vmatpush1.bf16.msra.mxu0 0
    %214 = vmatprep.subr.bf16.mxu0 0
    %215 = vmatpush1.bf16.msra.mxu0 0
    %216 = vmatprep.subr.bf16.mxu0 0
    %217 = vmatpush1.bf16.msra.mxu0 0
    %218 = vmatprep.subr.bf16.mxu0 0
    %219 = vmatpush1.bf16.msra.mxu0 0
    %220 = vmatprep.subr.bf16.mxu0 0
    %221 = vmatpush1.bf16.msra.mxu0 0
    %222 = vmatprep.subr.bf16.mxu0 0
    %223 = vmatpush1.bf16.msra.mxu0 0
    %224 = vmatprep.subr.bf16.mxu0 0
    %225 = vmatpush1.bf16.msra.mxu0 0
    %226 = vmatprep.mubr.bf16.mxu0 0
    %227 = vmatmul.mubr.bf16.gmra.mrb[0].mxu0 %v141
    %v228 = vpop.f32.mrb[0].mxu0
    %v229 = vadd.f32 %v145, %v228
    %v230 = vpop.f32.mrb[0].mxu0
    %v231 = vpop.f32.mrb[0].mxu0
    %v232 = vadd.f32 %v145, %v231
    %v233 = vpop.f32.mrb[0].mxu0
    %234 = vdwg.mxu0
    %v235 = vmax.f32 %v229, 0.0
    %v236 = vmax.f32 %v232, 0.0
    %v237 = vld [vmem:[#allocation4] sm:$0xff]
    %v238 = vld [vmem:[#allocation4 + $0x8] sm:$0xff]
    %v239 = vld [vmem:[#allocation4 + $0x10] sm:$0xff]
    %v240 = vld [vmem:[#allocation4 + $0x18] sm:$0xff]
    %v241 = vld [vmem:[#allocation4 + $0x20] sm:$0xff]
    %v242 = vld [vmem:[#allocation4 + $0x28] sm:$0xff]
    %v243 = vld [vmem:[#allocation4 + $0x30] sm:$0xff]
    %v244 = vld [vmem:[#allocation4 + $0x38] sm:$0xff]
    %v245 = vld [vmem:[#allocation4 + $0x40] sm:$0xff]
    %v246 = vld [vmem:[#allocation4 + $0x48] sm:$0xff]
    %v247 = vld [vmem:[#allocation4 + $0x50] sm:$0xff]
    %v248 = vld [vmem:[#allocation4 + $0x58] sm:$0xff]
    %v249 = vld [vmem:[#allocation4 + $0x60] sm:$0xff]
    %v250 = vld [vmem:[#allocation4 + $0x68] sm:$0xff]
    %v251 = vld [vmem:[#allocation4 + $0x70] sm:$0xff]
    %v252 = vld [vmem:[#allocation4 + $0x78] sm:$0xff]
    %v253 = vlaneseq
    %v254 = vshrl.u32 %v253, 7
    %v255 = vsub.s32 0, %v254
    %v256 = vrot.slane %v70, %v255
    %257 = vmatprep.subr.mxu0 0.0
    %258 = vmatpush1.msra.mxu0 %v237
    %259 = vmatprep.subr.mxu0 0.0
    %260 = vmatpush1.msra.mxu0 %v238
    %261 = vmatprep.subr.mxu0 0.0
    %262 = vmatpush1.msra.mxu0 %v239
    %263 = vmatprep.subr.mxu0 0.0
    %264 = vmatpush1.msra.mxu0 %v240
    %265 = vmatprep.subr.mxu0 0.0
    %266 = vmatpush1.msra.mxu0 %v241
    %267 = vmatprep.subr.mxu0 0.0
    %268 = vmatpush1.msra.mxu0 %v242
    %269 = vmatprep.subr.mxu0 0.0
    %270 = vmatpush1.msra.mxu0 %v243
    %271 = vmatprep.subr.mxu0 0.0
    %272 = vmatpush1.msra.mxu0 %v244
    %273 = vmatprep.subr.mxu0 0.0
    %274 = vmatpush1.msra.mxu0 %v245
    %275 = vmatprep.subr.mxu0 0.0
    %276 = vmatpush1.msra.mxu0 %v246
    %277 = vmatprep.subr.mxu0 0.0
    %278 = vmatpush1.msra.mxu0 %v247
    %279 = vmatprep.subr.mxu0 0.0
    %280 = vmatpush1.msra.mxu0 %v248
    %281 = vmatprep.subr.mxu0 0.0
    %282 = vmatpush1.msra.mxu0 %v249
    %283 = vmatprep.subr.mxu0 0.0
    %284 = vmatpush1.msra.mxu0 %v250
    %285 = vmatprep.subr.mxu0 0.0
    %286 = vmatpush1.msra.mxu0 %v251
    %287 = vmatprep.subr.mxu0 0.0
    %288 = vmatpush1.msra.mxu0 %v252
    %289 = vmatprep.subr.mxu0 0.0
    %290 = vmatpush1.msra.mxu0 0.0
    %291 = vmatprep.subr.mxu0 0.0
    %292 = vmatpush1.msra.mxu0 0.0
    %293 = vmatprep.subr.mxu0 0.0
    %294 = vmatpush1.msra.mxu0 0.0
    %295 = vmatprep.subr.mxu0 0.0
    %296 = vmatpush1.msra.mxu0 0.0
    %297 = vmatprep.subr.mxu0 0.0
    %298 = vmatpush1.msra.mxu0 0.0
    %299 = vmatprep.subr.mxu0 0.0
    %300 = vmatpush1.msra.mxu0 0.0
    %301 = vmatprep.subr.mxu0 0.0
    %302 = vmatpush1.msra.mxu0 0.0
    %303 = vmatprep.subr.mxu0 0.0
    %304 = vmatpush1.msra.mxu0 0.0
    %305 = vmatprep.subr.mxu0 0.0
    %306 = vmatpush1.msra.mxu0 0.0
    %307 = vmatprep.subr.mxu0 0.0
    %308 = vmatpush1.msra.mxu0 0.0
    %309 = vmatprep.subr.mxu0 0.0
    %310 = vmatpush1.msra.mxu0 0.0
    %311 = vmatprep.subr.mxu0 0.0
    %312 = vmatpush1.msra.mxu0 0.0
    %313 = vmatprep.subr.mxu0 0.0
    %314 = vmatpush1.msra.mxu0 0.0
    %315 = vmatprep.subr.mxu0 0.0
    %316 = vmatpush1.msra.mxu0 0.0
    %317 = vmatprep.subr.mxu0 0.0
    %318 = vmatpush1.msra.mxu0 0.0
    %319 = vmatprep.subr.mxu0 0.0
    %320 = vmatpush1.msra.mxu0 0.0
    %321 = vmatprep.mubr.f32.mxu0 0.0
    %322 = vmatmul.mubr.f32.gmra.mrb[0].mxu0 %v235
    %v323 = vpop.f32.mrb[0].mxu0
    %v324 = vadd.f32 %v256, %v323
    %v325 = vpop.f32.mrb[0].mxu0
    %326 = vmatprep.mubr.f32.mxu0 0.0
    %327 = vmatmul.mubr.f32.gmra.mrb[0].mxu0 %v236
    %v328 = vpop.f32.mrb[0].mxu0
    %v329 = vadd.f32 %v256, %v328
    %v330 = vpop.f32.mrb[0].mxu0
    %331 = vdwg.mxu0
    %v332 = vtanh.pop %v324
    %v333 = vtanh.pop %v329
    %v334 = vlaneseq
    %v335 = vshrl.u32 %v334, 7
    %v336 = vsub.s32 0, %v335
    %v337 = vrot.slane %v71, %v336
    %v338 = vmul.f32 %v332, %v337
    %v339 = vmul.f32 %v333, %v337
    %v340 = vlaneseq
    %v341 = vshrl.u32 %v340, 7
    %v342 = vsub.s32 0, %v341
    %v343 = vrot.slane %v72, %v342
    %v344 = vadd.f32 %v338, %v343
    %v345 = vadd.f32 %v339, %v343
    %vm346 = vcmask 64512
    %347 = vst.msk [vmem:[%s4] sm:$0xff] %vm346, %v344
    %348 = vst.msk [vmem:[%s4 + $0x8] sm:$0xff] %vm346, %v345
    // Predicated region
    $region26: #{actor_forward.1} parent=1 // pred_check
      _
    $region27: #{actor_forward.1} parent=1 // pred_check_branch
      %350 = sbr.rel (0) target = $region29
    $region28: #{actor_forward.1} parent=1 // pred_region
      _
    $region29: #{actor_forward.1} parent=1 // pred_fallthru
      _
    // Predicated region
    $region30: #{actor_forward.1} parent=1 // pred_check
      _
    $region31: #{actor_forward.1} parent=1 // pred_check_branch
      %352 = sbr.rel (0) target = $region33
    $region32: #{actor_forward.1} parent=1 // pred_region
      _
    $region33: #{actor_forward.1} parent=1 // pred_fallthru
      _
    %353 = vsyncpa [#allocation3], 1
    %354 = vsyncpa [#allocation5], 1

</llo_original>
